<compile_context>
chip_gen: v7x
topology: tpu7x:2x2x1
jax: 0.10.0
libtpu: 0.0.40
codegen_flags: <defaults>
</compile_context>

<pallas_src>
import jax
import jax.numpy as jnp
from jax.experimental import pallas as pl
from jax.experimental.pallas import tpu as pltpu


def _round_up(x: int, m: int) -> int:
    return -(-x // m) * m


def _padded_tile_bytes(rows: int, cols: int, dtype) -> int:
    """VMEM bytes of a (rows, cols) slab after (sublane, lane) tile padding."""
    isz = jnp.dtype(dtype).itemsize
    packing = max(1, 4 // isz)          # f32: 1, bf16: 2, int8/fp8: 4
    sub = 8 * packing                   # sublane multiple for this dtype
    return _round_up(max(rows, 1), sub) * _round_up(max(cols, 1), 128) * isz


def _vmem_capacity_bytes() -> int:
    try:
        cap = getattr(pltpu.get_tpu_info(), "vmem_capacity_bytes", None)
        if cap:
            return int(cap)
    except Exception:
        pass
    return 64 * 1024 * 1024             # v7x floor; v5e/v6e have 128 MiB


def _make_crop_kernel(tb, num_full, rem, ylow, hc, xlow, xhigh):
    def kernel(x_hbm, o_ref, buf, sem):
        i = pl.program_id(0)

        def copy_tile(count):
            # One strided DMA pulls only the Hc cropped rows of `count`
            # images straight from HBM into the staging slab; the lane (X)
            # crop happens on the VMEM tile just before the store into the
            # pipelined output block.
            def body():
                cp = pltpu.make_async_copy(
                    x_hbm.at[pl.ds(i * tb, count), pl.ds(ylow, hc), :],
                    buf.at[0:count],
                    sem,
                )
                cp.start()
                cp.wait()
                o_ref[0:count] = buf[0:count, :, xlow:xhigh]
            return body

        if rem == 0:
            copy_tile(tb)()
        else:
            pl.when(i < num_full)(copy_tile(tb))
            # Static-size ragged tail: only rows [0, rem) of the final output
            # block are in bounds; Pallas masks the rest on writeback.
            pl.when(i == num_full)(copy_tile(rem))

    return kernel


def crop_layer(images4D: jax.Array, H: int, W: int) -> jax.Array:
    """Pallas implementation of Croplayer.forward.

    Args:
      images4D: array of shape (N, C, Him, Wim).
      H, W: target crop sizes from setup_params.
    Returns:
      Center crop images4D[:, :, Ylow:Yhigh, Xlow:Xhigh], same dtype as input.
    """
    N, C, Him, Wim = images4D.shape
    dtype = images4D.dtype
    isz = jnp.dtype(dtype).itemsize

    # Same arithmetic as the PyTorch module (nonnegative ints so
    # np.floor(x/2) == x//2); slice.indices gives exact Python/torch
    # basic-slicing behavior, including negative-start wraparound.
    ylow = Him // 2 - H // 2
    yhigh = Him // 2 + H // 2 + 1
    xlow = Wim // 2 - W // 2
    xhigh = Wim // 2 + W // 2 + 1
    ys, ye, _ = slice(ylow, yhigh).indices(Him)
    xs, xe, _ = slice(xlow, xhigh).indices(Wim)
    Hc = max(0, ye - ys)
    Wc = max(0, xe - xs)

    if Hc == 0 or Wc == 0 or N * C == 0:
        # Degenerate empty crop — nothing for a kernel to do.
        return images4D[:, :, ys:ye, xs:xe]

    NC = N * C
    x = images4D.reshape(NC, Him, Wim)  # free view of the contiguous buffer

    # ---- Tile sizing against the real (padded) VMEM footprint --------------
    # Per image in the batch tile: one staging slab (Hc, Wim) + two
    # double-buffered output blocks (Hc, Wc) (Pallas pipelines the output).
    per_image = _padded_tile_bytes(Hc, Wim, dtype) + 2 * _padded_tile_bytes(Hc, Wc, dtype)
    vmem_cap = _vmem_capacity_bytes()
    budget = min((vmem_cap * 3) // 5, 48 * 1024 * 1024)

    tb = max(1, min(NC, budget // max(1, per_image)))
    if NC >= 2:
        tb = min(tb, pl.cdiv(NC, 2))    # keep >= 2 grid steps for megacore parts
    tb = int(tb)
    # Note: a single enormous image whose cropped rows exceed the budget would
    # need an extra H-tiled grid axis; not required for this model's shapes.

    num_full, rem = divmod(NC, tb)
    grid = (num_full + (1 if rem else 0),)

    footprint = tb * per_image
    vmem_limit = int(min(vmem_cap, max(footprint + (4 << 20), 16 << 20)))

    # Pure data movement: only cropped rows are read, only the crop is written.
    cost = pl.CostEstimate(
        flops=0,
        transcendentals=0,
        bytes_accessed=NC * Hc * Wim * isz + NC * Hc * Wc * isz,
    )

    kernel = _make_crop_kernel(tb, num_full, rem, ys, Hc, xs, xe)

    out = pl.pallas_call(
        kernel,
        out_shape=jax.ShapeDtypeStruct((NC, Hc, Wc), dtype),
        grid_spec=pltpu.PrefetchScalarGridSpec(
            num_scalar_prefetch=0,
            grid=grid,
            in_specs=[pl.BlockSpec(memory_space=pl.ANY)],   # raw HBM ref; manual DMA
            out_specs=pl.BlockSpec((tb, Hc, Wc), lambda i: (i, 0, 0)),
            scratch_shapes=[
                pltpu.VMEM((tb, Hc, Wim), dtype),
                pltpu.SemaphoreType.DMA(()),
            ],
        ),
        compiler_params=pltpu.CompilerParams(
            dimension_semantics=("parallel",),
            vmem_limit_bytes=vmem_limit,
        ),
        cost_estimate=cost,
    )(x)

    return out.reshape(N, C, Hc, Wc)


if __name__ == "__main__":
    key = jax.random.PRNGKey(0)

    # Small shapes consistent with the module: batch=2, channels=4, 16x16
    # images, target crop 13 -> center 13x13 window (rows/cols 2..14).
    N, C, Him, Wim = 2, 4, 16, 16
    setup_params = {"H": 13, "W": 13}

    images4D = jax.random.uniform(
        key, (N, C, Him, Wim), dtype=jnp.float32, minval=-1.0, maxval=1.0
    )

    out = crop_layer(images4D, setup_params["H"], setup_params["W"])
    out = jax.block_until_ready(out)

    # Pure-JAX reference with identical slice arithmetic.
    ylow = Him // 2 - setup_params["H"] // 2
    yhigh = Him // 2 + setup_params["H"] // 2 + 1
    xlow = Wim // 2 - setup_params["W"] // 2
    xhigh = Wim // 2 + setup_params["W"] // 2 + 1
    ref = images4D[:, :, ylow:yhigh, xlow:xhigh]

    assert out.shape == ref.shape, (out.shape, ref.shape)
    assert out.dtype == images4D.dtype
    assert jnp.array_equal(out, ref)

    print("KERNEL_OK")
</pallas_src>

<mosaic_0001>
module attributes {stable_mosaic.version = 11 : i64} {
  func.func @kernel(%arg0: i32, %arg1: memref<8x16x16xf32, #tpu.memory_space<any>>, %arg2: memref<4x13x13xf32, #tpu.memory_space<vmem>>, %arg3: memref<4x13x16xf32, #tpu.memory_space<vmem>>, %arg4: memref<!tpu.dma_semaphore, #tpu.memory_space<semaphore_mem>>) attributes {dimension_semantics = [#tpu.dimension_semantics<parallel>], iteration_bounds = array<i64: 2>, scalar_prefetch = 0 : i64, scratch_operands = 2 : i64, tpu.core_type = #tpu.core_type<tc>, window_params = [{}, {transform_indices = @transform_1, window_bounds = array<i64: 4, 13, 13>}]} {
    %c4_i32 = arith.constant 4 : i32
    %0 = arith.muli %arg0, %c4_i32 : i32
    %c2_i32 = arith.constant 2 : i32
    %c0_i32 = arith.constant 0 : i32
    %1 = tpu.memref_slice %arg1[%0, %c2_i32, %c0_i32] : memref<8x16x16xf32, #tpu.memory_space<any>> -> memref<4x13x16xf32, #tpu.memory_space<any>>
    %c0_i32_0 = arith.constant 0 : i32
    %c0_i32_1 = arith.constant 0 : i32
    %c0_i32_2 = arith.constant 0 : i32
    %2 = tpu.memref_slice %arg3[%c0_i32_0, %c0_i32_1, %c0_i32_2] : memref<4x13x16xf32, #tpu.memory_space<vmem>> -> memref<4x13x16xf32, #tpu.memory_space<vmem>>
    tpu.enqueue_dma source(%1 : memref<4x13x16xf32, #tpu.memory_space<any>>) target(%2 : memref<4x13x16xf32, #tpu.memory_space<vmem>>) target_semaphore(%arg4 : memref<!tpu.dma_semaphore, #tpu.memory_space<semaphore_mem>>)
    %c2_i32_3 = arith.constant 2 : i32
    %c0_i32_4 = arith.constant 0 : i32
    %3 = tpu.memref_slice %arg1[%0, %c2_i32_3, %c0_i32_4] : memref<8x16x16xf32, #tpu.memory_space<any>> -> memref<4x13x16xf32, #tpu.memory_space<any>>
    %c0_i32_5 = arith.constant 0 : i32
    %c0_i32_6 = arith.constant 0 : i32
    %c0_i32_7 = arith.constant 0 : i32
    %4 = tpu.memref_slice %arg3[%c0_i32_5, %c0_i32_6, %c0_i32_7] : memref<4x13x16xf32, #tpu.memory_space<vmem>> -> memref<4x13x16xf32, #tpu.memory_space<vmem>>
    tpu.wait_dma2 semaphore(%arg4 : memref<!tpu.dma_semaphore, #tpu.memory_space<semaphore_mem>>) src(%3 : memref<4x13x16xf32, #tpu.memory_space<any>>) dst(%4 : memref<4x13x16xf32, #tpu.memory_space<vmem>>)
    %c0 = arith.constant 0 : index
    %c0_8 = arith.constant 0 : index
    %c2 = arith.constant 2 : index
    %5 = vector.load %arg3[%c0, %c0_8, %c2] : memref<4x13x16xf32, #tpu.memory_space<vmem>>, vector<4x13x13xf32>
    %c0_9 = arith.constant 0 : index
    %c0_10 = arith.constant 0 : index
    %c0_11 = arith.constant 0 : index
    %6 = vector.load %arg2[%c0_9, %c0_10, %c0_11] : memref<4x13x13xf32, #tpu.memory_space<vmem>>, vector<4x13x13xf32>
    tpu.vector_store %arg2[%c0_9, %c0_10, %c0_11], %5 {strides = array<i32>} : memref<4x13x13xf32, #tpu.memory_space<vmem>>, vector<4x13x13xf32>,
    return
  }
  func.func @transform_1(%arg0: i32) -> (i32, i32, i32) {
    %c0_i32 = arith.constant 0 : i32
    %c0_i32_0 = arith.constant 0 : i32
    %c0_i32_1 = arith.constant 0 : i32
    return %arg0, %c0_i32, %c0_i32_0 : i32, i32, i32
  }
}

</mosaic_0001>

<llo_original>
// kernel: tpu_custom_call.1
$region0: #{tpu_custom_call.1}
  #allocation0 [shape = 'u32[]', space=smem, size = 0x4, offset = 0x4, fixed_abs, tag = 'smem constant byte address 0x4 - core index']
  #allocation1 [shape = 'u32[144,128]{1,0:T(1,128)}', space=vmem, size = 0x12000, scoped, tag = 'internal scratch']
  #allocation2 [shape = 'f32[4,13,16]{2,1,0:T(8,128)}', space=vmem, size = 0x8000, scoped, tag = 'scratch operand']
  #allocation3 [shape = 's32[1]{0}', space=sflag, size = 0x4, scoped, tag = 'scratch operand']
  #allocation4 [shape = 's32[]', space=sflag, size = 0x4, offset = 0, fixed_abs, tag = 'sflag constant byte address 0x0 - dummy sync flag']
  %s0 = inlined_call_operand.hbm [shape: f32[8,16,16], index: 0, kind: input, shape index: {}]
  %s1 = inlined_call_operand.vmem [shape: f32[8,13,13], index: 1, kind: output, shape index: {}]
  %s2 = sld [smem:[#allocation0]]
  $region25: #{tpu_custom_call.1} parent=0
    _
  %s4 = ssub.s32 1, %s2
  %s5 = scalar_select 0, %s4, %s2
  loop: start=0, step=1, limit=3
  $region2: #{tpu_custom_call.1} parent=0 // loop_pre_header
    _
  $region3: #{tpu_custom_call.1} parent=0 // loop_header
    %s7 = sphi 0, %s11
    %p8 = scmp.ge.s32.totalorder %s7, 3
    %s16 = sphi 0, %s18
    %s19 = sphi 0, %s16
    %s29 = sphi 0, %s19
  $region4: #{tpu_custom_call.1} parent=0 // loop_header_branch
    %10 = sbr.rel (%p8) target = $region8
  $region5: #{tpu_custom_call.1} parent=0 // loop_body
    %s12 = ssub.s32 %s7, 1
    %s13 = sadd.s32 %s7, 1
    %s14 = ssub.s32 %s7, %s13
    %p15 = scmp.eq.s32.totalorder %s14, 0
    %s17 = sadd.s32 %s16, 1
    %s18 = scalar_select %p15, %s16, %s17
    %p20 = pneg %p15
    %p21 = scmp.eq.s32.totalorder %s7, 1
    %p22 = por %p20, %p21
    %p23 = scmp.ne.s32.totalorder %s16, %s19
    %p24 = scmp.eq.s32.totalorder %s7, 0
    %p25 = por %p23, %p24
    %p26 = scmp.ne.s32.totalorder %s16, %s19
    %p27 = scmp.eq.s32.totalorder %s12, 1
    %p28 = por %p26, %p27
    %p30 = scmp.ne.s32.totalorder %s19, %s29
    %p31 = scmp.eq.s32.totalorder %s12, 0
    %p32 = por %p30, %p31
    %p33 = scmp.lt.s32.totalorder %s7, 2
    // Predicated region
    $region9: #{tpu_custom_call.1} parent=5 // pred_check
      %p34 = pneg %p33
    $region10: #{tpu_custom_call.1} parent=5 // pred_check_branch
      %36 = sbr.rel (%p34) target = $region12
    $region11: #{tpu_custom_call.1} parent=5 // pred_region
      %p37 = pneg %p25
      %p38 = pneg %p22
      %s39 = smul.u32 4, %s7
      %p40 = scmp.lt.s32.totalorder %s39, 7
      %s41 = scalar_select %p40, %s39, 7
      %s42 = smul.addr %s41, 2
      %s43 = smul.addr %s42, 8
      %s44 = scalar_lea.vmem %s1, %s43
      %s45 = smul.u32 4, %s7
      %p46 = scmp.lt.s32.totalorder %s45, 7
      %s47 = scalar_select %p46, %s45, 7
      %s48 = smul.addr %s47, 2
      %s49 = smul.addr %s48, 8
      %s50 = scalar_lea.vmem %s1, %s49
      %s51 = smul.u32 4, %s7
      %s52 = smul.u32 %s7, 4
      %s53 = smul.u32 %s52, 16
      %s54 = sadd.s32 2, %s53
      %s55 = smul.addr %s54, 16
      %s56 = scalar_lea.hbm %s0, %s55
      %s58 = sshll.u32 [#allocation2], 4
      %s59 = int_to_ptr.vmem [resolvable:$true] %s58
      %61 = dma.hbm_to_vmem [thread:$0]  %s56, 832, %s59, [#allocation3], 256, 256, 13
      %s62 = smul.u32 4, 13
      %s63 = smul.u32 %s62, 1
      %s64 = sshll.u32 %s63, 4
      %65 = dma.done [#allocation3], %s64
      %v66 = vld [vmem:[#allocation2] sm:$0xff]
      %v67 = vld [vmem:[#allocation2 + $0x8] sm:$0x1f]
      %v68 = vld [vmem:[#allocation2 + $0x10] sm:$0xff]
      %v69 = vld [vmem:[#allocation2 + $0x18] sm:$0x1f]
      %v70 = vld [vmem:[#allocation2 + $0x20] sm:$0xff]
      %v71 = vld [vmem:[#allocation2 + $0x28] sm:$0x1f]
      %v72 = vld [vmem:[#allocation2 + $0x30] sm:$0xff]
      %v73 = vld [vmem:[#allocation2 + $0x38] sm:$0x1f]
      %82 = vrot.lane.b32.xlu0 %v66, 126
      %v83 = vpop.permute.xlu0 %82
      %84 = vrot.lane.b32.xlu0 %v67, 126
      %v85 = vpop.permute.xlu0 %84
      %86 = vrot.lane.b32.xlu0 %v68, 126
      %v87 = vpop.permute.xlu0 %86
      %88 = vrot.lane.b32.xlu0 %v69, 126
      %v89 = vpop.permute.xlu0 %88
      %90 = vrot.lane.b32.xlu0 %v70, 126
      %v91 = vpop.permute.xlu0 %90
      %92 = vrot.lane.b32.xlu0 %v71, 126
      %v93 = vpop.permute.xlu0 %92
      %94 = vrot.lane.b32.xlu0 %v72, 126
      %v95 = vpop.permute.xlu0 %94
      %96 = vrot.lane.b32.xlu0 %v73, 126
      %v97 = vpop.permute.xlu0 %96
      %vm106 = vcmask 105472
      %107 = vst.msk [vmem:[%s50] sm:$0xff] %vm106, %v83
      %vm108 = vcmask 102400
      %109 = vst.msk [vmem:[%s50 + $0x8] sm:$0x1f] %vm108, %v85
      %110 = vst.msk [vmem:[%s50 + $0x10] sm:$0xff] %vm106, %v87
      %111 = vst.msk [vmem:[%s50 + $0x18] sm:$0x1f] %vm108, %v89
      %112 = vst.msk [vmem:[%s50 + $0x20] sm:$0xff] %vm106, %v91
      %113 = vst.msk [vmem:[%s50 + $0x28] sm:$0x1f] %vm108, %v93
      %114 = vst.msk [vmem:[%s50 + $0x30] sm:$0xff] %vm106, %v95
      %115 = vst.msk [vmem:[%s50 + $0x38] sm:$0x1f] %vm108, %v97
      %s116 = smul.u32 4, %s7
      %p117 = scmp.lt.s32.totalorder %s116, 7
      %s118 = scalar_select %p117, %s116, 7
      %s119 = smul.addr %s118, 2
      %s120 = smul.addr %s119, 8
      %s121 = scalar_lea.vmem %s1, %s120
      // Predicated region
      $region13: #{tpu_custom_call.1} parent=11 // pred_check
        %p122 = pneg %p22
      $region14: #{tpu_custom_call.1} parent=11 // pred_check_branch
        %124 = sbr.rel (%p122) target = $region16
      $region15: #{tpu_custom_call.1} parent=11 // pred_region
        %s125 = smul.u32 4, %s7
      $region16: #{tpu_custom_call.1} parent=11 // pred_fallthru
        _
    $region12: #{tpu_custom_call.1} parent=5 // pred_fallthru
      _
    %p126 = scmp.le.s32.totalorder 1, %s7
    // Predicated region
    $region17: #{tpu_custom_call.1} parent=5 // pred_check
      %p127 = pneg %p126
    $region18: #{tpu_custom_call.1} parent=5 // pred_check_branch
      %129 = sbr.rel (%p127) target = $region20
    $region19: #{tpu_custom_call.1} parent=5 // pred_region
      %s130 = ssub.s32 %s7, 1
      // Predicated region
      $region21: #{tpu_custom_call.1} parent=19 // pred_check
        %p131 = pneg %p28
      $region22: #{tpu_custom_call.1} parent=19 // pred_check_branch
        %133 = sbr.rel (%p131) target = $region24
      $region23: #{tpu_custom_call.1} parent=19 // pred_region
        %s134 = smul.u32 4, %s12
        %p135 = scmp.lt.s32.totalorder %s134, 7
        %s136 = scalar_select %p135, %s134, 7
        %s137 = smul.addr %s136, 2
        %s138 = smul.addr %s137, 8
        %s139 = scalar_lea.vmem %s1, %s138
      $region24: #{tpu_custom_call.1} parent=19 // pred_fallthru
        _
    $region20: #{tpu_custom_call.1} parent=5 // pred_fallthru
      _
  $region6: #{tpu_custom_call.1} parent=0 // loop_footer
    %s11 = sadd.s32 1, %s7
  $region7: #{tpu_custom_call.1} parent=0 // loop_footer_branch
    %6 = sbr.rel target = $region3
  $region8: #{tpu_custom_call.1} parent=0 // loop_exit
    _
  %140 = vsyncmov [#allocation3]
  %s141 = vpop.sfrf %140
  %p142 = scmp.eq.s32.totalorder %s141, 0
  %p143 = pneg %p142
  %145 = shalt.err (%p143)

</llo_original>
